<compile_context>
chip_gen: v6e
topology: v6e:2x2x1
jax: 0.10.0
libtpu: 0.0.40
codegen_flags: <defaults>
</compile_context>

<pallas_src>
from functools import partial

import jax
import jax.numpy as jnp
import numpy as np
from jax import lax
from jax.experimental import pallas as pl
from jax.experimental.pallas import tpu as pltpu


_TARGET_BLOCK_BYTES = 2 << 20  # ~2 MiB per input block (safe on v5e/v6e/v7x)


def _cparams(sem):
    return pltpu.CompilerParams(
        dimension_semantics=sem,
        vmem_limit_bytes=32 * 1024 * 1024,
    )


# ----------------------------- kernels ------------------------------------ #

def _elementwise_kernel(x_ref, o_ref, *, op):
    x = x_ref[...]
    if op == "sigmoid":
        o_ref[...] = jax.nn.sigmoid(x.astype(jnp.float32)).astype(o_ref.dtype)
    elif op == "tanh":
        o_ref[...] = jnp.tanh(x.astype(jnp.float32)).astype(o_ref.dtype)
    else:
        o_ref[...] = x


def _lanereduce_kernel(x_ref, o_ref, *, op):
    # Reduction over the last (lane) axis of a (rows, C) block.
    x = x_ref[...]
    if op in ("softmax", "logsoftmax"):
        xf = x.astype(jnp.float32)
        m = jnp.max(xf, axis=-1, keepdims=True)
        e = jnp.exp(xf - m)
        s = jnp.sum(e, axis=-1, keepdims=True)
        if op == "softmax":
            o_ref[...] = (e * pl.reciprocal(s)).astype(o_ref.dtype)
        else:
            o_ref[...] = (xf - m - jnp.log(s)).astype(o_ref.dtype)
    else:  # argmax along lanes (native dtype compare — no lossy f32 cast)
        c = x.shape[-1]
        m = jnp.max(x, axis=-1, keepdims=True)
        idx = lax.broadcasted_iota(jnp.int32, x.shape, x.ndim - 1)
        idx = jnp.where(x == m, idx, c)  # first maximal index (torch semantics)
        o_ref[...] = jnp.min(idx, axis=-1, keepdims=True).astype(jnp.int32)


def _chanreduce_kernel(x_ref, o_ref, *, op):
    # Reduction over axis 1 (sublane / channel axis) of a (1, C, tile_B) block.
    x = x_ref[...]
    if op in ("softmax", "logsoftmax"):
        xf = x.astype(jnp.float32)
        m = jnp.max(xf, axis=1, keepdims=True)
        e = jnp.exp(xf - m)
        s = jnp.sum(e, axis=1, keepdims=True)
        if op == "softmax":
            o_ref[...] = (e * pl.reciprocal(s)).astype(o_ref.dtype)
        else:
            o_ref[...] = (xf - m - jnp.log(s)).astype(o_ref.dtype)
    else:  # argmax over channels; lane-dense (1, 1, tile_B) output
        c = x.shape[1]
        m = jnp.max(x, axis=1, keepdims=True)
        idx = lax.broadcasted_iota(jnp.int32, x.shape, 1)
        idx = jnp.where(x == m, idx, c)
        o_ref[...] = jnp.min(idx, axis=1, keepdims=True).astype(jnp.int32)


def _global_argmax_kernel(x_ref, o_ref, m_sc, i_sc, *, total_rows, min_val,
                          cmp_dtype):
    # Tiled global argmax: running (max, flat index) kept in SMEM scratch.
    i = pl.program_id(0)
    x = x_ref[...].astype(cmp_dtype)  # exact widen (f32 for floats, i32 ints)
    br, w = x.shape
    row = lax.broadcasted_iota(jnp.int32, (br, w), 0) + i * br
    col = lax.broadcasted_iota(jnp.int32, (br, w), 1)
    valid = row < total_rows  # mask grid-OOB rows of the last block
    minv = jnp.asarray(min_val, cmp_dtype)
    xm = jnp.where(valid, x, minv)
    # NOTE: flat index is int32; fine for tensors < 2^31 elements.
    flat = row * w + col
    big = jnp.int32(np.iinfo(np.int32).max)

    m_blk = jnp.max(xm)
    idx_blk = jnp.min(jnp.where((xm == m_blk) & valid, flat, big))

    @pl.when(i == 0)
    def _():
        m_sc[0] = m_blk
        i_sc[0] = idx_blk

    @pl.when(i > 0)
    def _():
        take = m_blk > m_sc[0]  # strict > keeps the earliest index on ties
        i_sc[0] = jnp.where(take, idx_blk, i_sc[0])
        m_sc[0] = jnp.where(take, m_blk, m_sc[0])

    @pl.when(i == pl.num_programs(0) - 1)
    def _():
        # Full-block store (avoids a scalar store into a VMEM ref).
        o_ref[...] = jnp.full((1, 1), i_sc[0], jnp.int32)


# ----------------------------- tiling helpers ------------------------------ #

def _pick_sublane_block(rows, row_bytes, target=_TARGET_BLOCK_BYTES):
    """Rows per block: multiple of 8 (~target bytes), or full extent."""
    br = max(8, (target // max(row_bytes, 1)) // 8 * 8)
    if br >= rows:
        return rows  # single full-extent block (legal for any row count)
    return br


def _pick_lane_tile(b, c, itemsize, target=_TARGET_BLOCK_BYTES):
    """Lane tile over B so that C*tile*itemsize ~ target; multiple of 128."""
    t = max(128, (target // max(c * itemsize, 1)) // 128 * 128)
    if b % 128 == 0:
        return min(t, b)
    if b <= t:
        return b  # full-extent lane block (legal even if not %128)
    return t      # masked partial last block (t % 128 == 0)


def _argmax_cast(x):
    # Compare in a lossless dtype (no lossy float cast of wide ints / bools).
    dt = x.dtype
    if dt == jnp.bool_:
        return x.astype(jnp.int32)
    if jnp.issubdtype(dt, jnp.integer) and dt.itemsize < 4:
        return x.astype(jnp.int32)
    return x


def _legacy_softmax_dim(ndim):
    # torch.nn.functional._get_softmax_dim (dim=None legacy behavior).
    return 0 if ndim in (0, 1, 3) else 1


# ----------------------------- wrappers ------------------------------------ #

def _run_elementwise(x, op):
    if op == "identity":
        return x  # free: no kernel, no HBM traffic
    orig_shape = x.shape
    flat = x.reshape(-1)
    n = flat.shape[0]
    if n == 0:
        return x
    pad = (-n) % 128
    if pad:
        # Only for non-128-aligned sizes; keeps the lane-dense reshape legal.
        flat = jnp.pad(flat, (0, pad))
    npad = flat.shape[0]
    w = 128
    for cand in (4096, 2048, 1024, 512, 256):
        if npad % cand == 0:
            w = cand
            break
    x2 = flat.reshape(npad // w, w)
    rows = x2.shape[0]
    br = _pick_sublane_block(rows, w * x2.dtype.itemsize)
    out2 = pl.pallas_call(
        partial(_elementwise_kernel, op=op),
        out_shape=jax.ShapeDtypeStruct(x2.shape, x.dtype),
        grid=(pl.cdiv(rows, br),),
        in_specs=[pl.BlockSpec((br, w), lambda i: (i, 0))],
        out_specs=pl.BlockSpec((br, w), lambda i: (i, 0)),
        compiler_params=_cparams(("parallel",)),
    )(x2)
    out = out2.reshape(-1)
    if pad:
        out = out[:n]
    return out.reshape(orig_shape)


def _run_reduce(x, op, dim):
    """softmax / logsoftmax / argmax over axis `dim` — no wrapper transposes."""
    dim = dim % x.ndim
    shape = x.shape
    a = int(np.prod(shape[:dim], dtype=np.int64)) if dim > 0 else 1
    c = int(shape[dim])
    b = int(np.prod(shape[dim + 1:], dtype=np.int64)) if dim + 1 < x.ndim else 1

    if op == "argmax":
        x = _argmax_cast(x)
        out_shape_final = shape[:dim] + shape[dim + 1:]
        out_dtype = jnp.int32  # TODO(synk): torch.argmax returns int64; x64 off.
    else:
        out_shape_final = shape
        out_dtype = x.dtype

    if b == 1:
        # Reduced axis is last: lane reduction over (A, C).
        x2 = x.reshape(a, c)
        br = _pick_sublane_block(a, c * x2.dtype.itemsize)
        out_cols = 1 if op == "argmax" else c
        out = pl.pallas_call(
            partial(_lanereduce_kernel, op=op),
            out_shape=jax.ShapeDtypeStruct((a, out_cols), out_dtype),
            grid=(pl.cdiv(a, br),),
            in_specs=[pl.BlockSpec((br, c), lambda i: (i, 0))],
            out_specs=pl.BlockSpec((br, out_cols), lambda i: (i, 0)),
            compiler_params=_cparams(("parallel",)),
        )(x2)
        return out.reshape(out_shape_final)

    # General case: reshape (no transpose) to (A, C, B); reduce over sublanes,
    # keep B lane-dense in both input and output.
    x3 = x.reshape(a, c, b)
    tb = _pick_lane_tile(b, c, x3.dtype.itemsize)
    grid = (a, pl.cdiv(b, tb))
    if op == "argmax":
        out = pl.pallas_call(
            partial(_chanreduce_kernel, op=op),
            out_shape=jax.ShapeDtypeStruct((a, 1, b), out_dtype),
            grid=grid,
            in_specs=[pl.BlockSpec((1, c, tb), lambda i, j: (i, 0, j))],
            out_specs=pl.BlockSpec((1, 1, tb), lambda i, j: (i, 0, j)),
            compiler_params=_cparams(("parallel", "parallel")),
        )(x3)
        return out.reshape(out_shape_final)
    out = pl.pallas_call(
        partial(_chanreduce_kernel, op=op),
        out_shape=jax.ShapeDtypeStruct((a, c, b), out_dtype),
        grid=grid,
        in_specs=[pl.BlockSpec((1, c, tb), lambda i, j: (i, 0, j))],
        out_specs=pl.BlockSpec((1, c, tb), lambda i, j: (i, 0, j)),
        compiler_params=_cparams(("parallel", "parallel")),
    )(x3)
    return out.reshape(out_shape_final)


def _run_global_argmax(x):
    """torch.argmax(x, dim=None): tiled streaming reduction, scalar output."""
    x = _argmax_cast(x)
    flat = x.reshape(-1)
    n = flat.shape[0]
    if jnp.issubdtype(flat.dtype, jnp.floating):
        cmp_dtype = jnp.float32
        min_val = float("-inf")
    else:
        cmp_dtype = jnp.int32
        min_val = int(np.iinfo(np.int32).min)
    pad = (-n) % 128
    if pad:
        flat = jnp.pad(flat, (0, pad), constant_values=min_val)
    npad = flat.shape[0]
    w = 128
    for cand in (2048, 1024, 512, 256):
        if npad % cand == 0:
            w = cand
            break
    x2 = flat.reshape(npad // w, w)
    rows = x2.shape[0]
    br = _pick_sublane_block(rows, w * x2.dtype.itemsize)
    out = pl.pallas_call(
        partial(_global_argmax_kernel, total_rows=rows, min_val=min_val,
                cmp_dtype=cmp_dtype),
        out_shape=jax.ShapeDtypeStruct((1, 1), jnp.int32),
        grid=(pl.cdiv(rows, br),),
        in_specs=[pl.BlockSpec((br, w), lambda i: (i, 0))],
        out_specs=pl.BlockSpec((1, 1), lambda i: (0, 0)),
        scratch_shapes=[pltpu.SMEM((1,), cmp_dtype),
                        pltpu.SMEM((1,), jnp.int32)],
        compiler_params=_cparams(("arbitrary",)),
    )(x2)
    # TODO(synk): torch.argmax returns int64; int32 index here (x64 disabled).
    return out[0, 0]


class Activation:
    """JAX/Pallas port of mmseg's `Activation` module (no learnable params)."""

    def __init__(self, name, **params):
        if name is not None and not callable(name) and name not in (
            "identity", "sigmoid", "softmax2d", "softmax", "logsoftmax",
            "tanh", "argmax", "argmax2d",
        ):
            raise ValueError(
                "Activation should be callable/sigmoid/softmax/logsoftmax/"
                "tanh/None; got {}".format(name))
        self.name = name
        self.params = params

    def __call__(self, x):
        name, params = self.name, self.params
        if name is None or name == "identity":
            return x
        if name == "sigmoid":
            return _run_elementwise(x, "sigmoid")
        if name == "tanh":
            return _run_elementwise(x, "tanh")
        if name == "softmax2d":
            return _run_reduce(x, "softmax", dim=1)
        if name == "softmax":
            dim = params.get("dim", None)
            if dim is None:
                dim = _legacy_softmax_dim(x.ndim)
            return _run_reduce(x, "softmax", dim=dim)
        if name == "logsoftmax":
            dim = params.get("dim", None)
            if dim is None:
                dim = _legacy_softmax_dim(x.ndim)
            return _run_reduce(x, "logsoftmax", dim=dim)
        if name == "argmax":
            dim = params.get("dim", None)
            if dim is None:
                return _run_global_argmax(x)
            return _run_reduce(x, "argmax", dim=dim)
        if name == "argmax2d":
            return _run_reduce(x, "argmax", dim=1)
        # TODO(synk): arbitrary user callables cannot be lowered to Pallas generically.
        raise NotImplementedError("callable activations are not translated")


# ------------------------------- demo -------------------------------------- #

if __name__ == "__main__":
    key = jax.random.PRNGKey(0)
    x = jax.random.normal(key, (2, 4, 16, 16), dtype=jnp.float32)  # NCHW

    # identity (returns input directly — no kernel launch)
    y_id = jax.block_until_ready(Activation("identity")(x))
    np.testing.assert_allclose(np.asarray(y_id), np.asarray(x), rtol=0, atol=0)

    # sigmoid
    y_sig = jax.block_until_ready(Activation("sigmoid")(x))
    np.testing.assert_allclose(np.asarray(y_sig),
                               np.asarray(jax.nn.sigmoid(x)), rtol=1e-5, atol=1e-5)

    # tanh
    y_tanh = jax.block_until_ready(Activation("tanh")(x))
    np.testing.assert_allclose(np.asarray(y_tanh),
                               np.asarray(jnp.tanh(x)), rtol=1e-5, atol=1e-5)

    # softmax2d (softmax over channel dim=1, sublane-reduce path)
    y_sm2d = jax.block_until_ready(Activation("softmax2d")(x))
    np.testing.assert_allclose(np.asarray(y_sm2d),
                               np.asarray(jax.nn.softmax(x, axis=1)),
                               rtol=1e-5, atol=1e-5)

    # softmax over last dim (lane-reduce path)
    y_sm = jax.block_until_ready(Activation("softmax", dim=-1)(x))
    np.testing.assert_allclose(np.asarray(y_sm),
                               np.asarray(jax.nn.softmax(x, axis=-1)),
                               rtol=1e-5, atol=1e-5)

    # logsoftmax over channels
    y_lsm = jax.block_until_ready(Activation("logsoftmax", dim=1)(x))
    np.testing.assert_allclose(np.asarray(y_lsm),
                               np.asarray(jax.nn.log_softmax(x, axis=1)),
                               rtol=1e-5, atol=1e-5)

    # argmax2d (argmax over channel dim=1) -> (N, H, W) int32, lane-dense output
    y_am2d = jax.block_until_ready(Activation("argmax2d")(x))
    np.testing.assert_array_equal(np.asarray(y_am2d),
                                  np.asarray(jnp.argmax(x, axis=1)))

    # argmax over the last dim
    y_amlast = jax.block_until_ready(Activation("argmax", dim=3)(x))
    np.testing.assert_array_equal(np.asarray(y_amlast),
                                  np.asarray(jnp.argmax(x, axis=3)))

    # argmax with dim=None (flattened, tiled streaming reduction)
    y_am = jax.block_until_ready(Activation("argmax")(x))
    assert int(y_am) == int(jnp.argmax(x))

    print("KERNEL_OK")
</pallas_src>

<mosaic_0001>
module attributes {stable_mosaic.version = 11 : i64} {
  func.func @_elementwise_kernel(%arg0: i32, %arg1: memref<1x2048xf32, #tpu.memory_space<vmem>>, %arg2: memref<1x2048xf32, #tpu.memory_space<vmem>>) attributes {dimension_semantics = [#tpu.dimension_semantics<parallel>], iteration_bounds = array<i64: 1>, scalar_prefetch = 0 : i64, scratch_operands = 0 : i64, tpu.core_type = #tpu.core_type<tc>, window_params = [{transform_indices = @transform_0, window_bounds = array<i64: 1, 2048>}, {transform_indices = @transform_1, window_bounds = array<i64: 1, 2048>}]} {
    %c0 = arith.constant 0 : index
    %c0_0 = arith.constant 0 : index
    %0 = vector.load %arg1[%c0, %c0_0] : memref<1x2048xf32, #tpu.memory_space<vmem>>, vector<1x2048xf32>
    %1 = arith.negf %0 : vector<1x2048xf32>
    %2 = math.exp %1 : vector<1x2048xf32>
    %cst = arith.constant 1.000000e+00 : f32
    %3 = vector.broadcast %cst : f32 to vector<1x2048xf32>
    %4 = arith.addf %3, %2 : vector<1x2048xf32>
    %5 = arith.divf %3, %4 : vector<1x2048xf32>
    %c0_1 = arith.constant 0 : index
    %c0_2 = arith.constant 0 : index
    %6 = vector.load %arg2[%c0_1, %c0_2] : memref<1x2048xf32, #tpu.memory_space<vmem>>, vector<1x2048xf32>
    tpu.vector_store %arg2[%c0_1, %c0_2], %5 {strides = array<i32>} : memref<1x2048xf32, #tpu.memory_space<vmem>>, vector<1x2048xf32>,
    return
  }
  func.func @transform_0(%arg0: i32) -> (i32, i32) {
    %c0_i32 = arith.constant 0 : i32
    %c0_i32_0 = arith.constant 0 : i32
    return %arg0, %c0_i32 : i32, i32
  }
  func.func @transform_1(%arg0: i32) -> (i32, i32) {
    %c0_i32 = arith.constant 0 : i32
    %c0_i32_0 = arith.constant 0 : i32
    return %arg0, %c0_i32 : i32, i32
  }
}

</mosaic_0001>

<llo_original>
// kernel: tpu_custom_call.1
$region0: #{tpu_custom_call.1}
  #allocation0 [shape = 'u32[]', space=smem, size = 0x4, offset = 0x4, fixed_abs, tag = 'smem constant byte address 0x4 - core index']
  #allocation1 [shape = 'u32[144,128]{1,0:T(1,128)}', space=vmem, size = 0x12000, scoped, tag = 'internal scratch']
  %s0 = inlined_call_operand.hbm [shape: f32[1,2048], index: 0, kind: input, shape index: {}]
  %s1 = inlined_call_operand.hbm [shape: f32[1,2048], index: 1, kind: output, shape index: {}]
  %s2 = sld [smem:[#allocation0]]
  $region18: #{tpu_custom_call.1} parent=0
    _
  %s4 = ssub.s32 1, %s2
  %s5 = scalar_select 0, %s4, %s2
  $region1: #{tpu_custom_call.1} parent=0
    #allocation2 [shape = 'u8[8192]{0}', space=vmem, size = 0x2000, scoped, tag = 'input window, operand 0, single buffered']
    #allocation3 [shape = 's32[1]{0}', space=sflag, size = 0x4, scoped, tag = 'scoped memory for tpu_custom_call.1']
    #allocation4 [shape = 's32[1]{0}', space=sflag, size = 0x4, scoped, tag = 'scoped memory for tpu_custom_call.1']
    #allocation5 [shape = 'u8[8192]{0}', space=vmem, size = 0x2000, scoped, tag = 'output window, operand 0, single buffered']
    %6 = vsyncpa [#allocation3], 0
    %7 = vsyncpa [#allocation4], 0
    // Predicated region
    $region2: #{tpu_custom_call.1} parent=1 // pred_check
      _
    $region3: #{tpu_custom_call.1} parent=1 // pred_check_branch
      %9 = sbr.rel (0) target = $region5
    $region4: #{tpu_custom_call.1} parent=1 // pred_region
      %s11 = ssub.s32 256, 256
      %12 = vsyncadd [#allocation3], %s11
      %s14 = sshll.u32 [#allocation2], 4
      %s15 = int_to_ptr.vmem [resolvable:$true] %s14
      %17 = dma.hbm_to_vmem [thread:$0]  %s0, 256, %s15, [#allocation3]
    $region5: #{tpu_custom_call.1} parent=1 // pred_fallthru
      _
    // Predicated region
    $region6: #{tpu_custom_call.1} parent=1 // pred_check
      _
    $region7: #{tpu_custom_call.1} parent=1 // pred_check_branch
      %19 = sbr.rel (0) target = $region9
    $region8: #{tpu_custom_call.1} parent=1 // pred_region
      %20 = dma.done [#allocation3], 256
    $region9: #{tpu_custom_call.1} parent=1 // pred_fallthru
      _
    %v21 = vld [vmem:[#allocation2] sm:$0xff]
    %v22 = vld [vmem:[#allocation2 + $0x8] sm:$0xff]
    %v23 = vxor.u32 %v21, 2147483648
    %v24 = vxor.u32 %v22, 2147483648
    %v25 = vmul.f32 %v23, 1.442695
    %v26 = vpow.pop %v25
    %v27 = vmul.f32 %v24, 1.442695
    %v28 = vpow.pop %v27
    %v29 = vadd.f32 %v26, 1.0
    %v30 = vadd.f32 %v28, 1.0
    %v31 = vrcp.pop %v29
    %v32 = vmul.f32 1.0, %v31
    %v33 = vrcp.pop %v30
    %v34 = vmul.f32 1.0, %v33
    %35 = vst [vmem:[#allocation5] sm:$0xff] %v32
    %36 = vst [vmem:[#allocation5 + $0x8] sm:$0xff] %v34
    // Predicated region
    $region10: #{tpu_custom_call.1} parent=1 // pred_check
      _
    $region11: #{tpu_custom_call.1} parent=1 // pred_check_branch
      %38 = sbr.rel (0) target = $region13
    $region12: #{tpu_custom_call.1} parent=1 // pred_region
      %s40 = ssub.s32 256, 256
      %41 = vsyncadd [#allocation4], %s40
      %s43 = sshll.u32 [#allocation5], 4
      %s44 = int_to_ptr.vmem [resolvable:$true] %s43
      %46 = dma.vmem_to_hbm [thread:$0]  %s44, 256, %s1, [#allocation4]
    $region13: #{tpu_custom_call.1} parent=1 // pred_fallthru
      _
    // Predicated region
    $region14: #{tpu_custom_call.1} parent=1 // pred_check
      _
    $region15: #{tpu_custom_call.1} parent=1 // pred_check_branch
      %48 = sbr.rel (0) target = $region17
    $region16: #{tpu_custom_call.1} parent=1 // pred_region
      %49 = dma.done [#allocation4], 256
    $region17: #{tpu_custom_call.1} parent=1 // pred_fallthru
      _
    %50 = vsyncpa [#allocation3], 1
    %51 = vsyncpa [#allocation4], 1

</llo_original>
